<compile_context>
chip_gen: v6e
topology: v6e:2x2x1
jax: 0.10.0
libtpu: 0.0.40
codegen_flags: <defaults>
</compile_context>

<pallas_src>
import jax
import jax.numpy as jnp
from jax import lax
from jax.experimental import pallas as pl
from jax.experimental.pallas import tpu as pltpu


def _round_up(x, m):
    return ((x + m - 1) // m) * m


def _ce_partial_kernel(n_valid_ref, logits_ref, target_ref, part_ref):
    # n_valid_ref: (1,) int32 SMEM scalar (prefetched)
    # logits_ref : (TR, C) native dtype, VMEM row tile (last block may be partial)
    # target_ref : (TR, 1) int32,        VMEM row tile
    # part_ref   : (1, 8, 128) f32,      per-block partial sum (splatted, lane-dense)
    i = pl.program_id(0)
    n_valid = n_valid_ref[0]

    x = logits_ref[...].astype(jnp.float32)                 # upcast in-kernel (VPU slack)
    t = target_ref[...]                                     # (TR, 1) int32

    # Numerically stable log-sum-exp per row.
    m = jnp.max(x, axis=-1, keepdims=True)                  # (TR, 1)
    lse = m + jnp.log(jnp.sum(jnp.exp(x - m), axis=-1, keepdims=True))  # (TR, 1)

    # Target-class logit via lane-index select on the RAW x (one fewer f32 temp).
    col = lax.broadcasted_iota(jnp.int32, x.shape, 1)        # (TR, C)
    tgt_x = jnp.sum(jnp.where(col == t, x, 0.0), axis=-1, keepdims=True)  # (TR, 1)

    per_row = lse - tgt_x                                    # (TR, 1) = -log p[target]

    # Mask rows beyond N (partial last block): garbage rows -> 0 before summing.
    tr = x.shape[0]
    row = i * tr + lax.broadcasted_iota(jnp.int32, (tr, 1), 0)
    per_row = jnp.where(row < n_valid, per_row, 0.0)

    part_ref[...] = jnp.broadcast_to(jnp.sum(per_row), part_ref.shape)


def cross_entropy_loss(logits, target, tile_rows=None):
    """Equivalent of nn.CrossEntropyLoss()(logits, target), mean reduction.

    logits: (N, C) float array of raw scores (any float dtype; streamed natively).
    target: (N,)   int array of class indices in [0, C).
    Returns a scalar float32 loss.
    """
    n, c = logits.shape
    itemsize = jnp.dtype(logits.dtype).itemsize

    # Sublane-packing multiple of the streamed dtype: 8 (f32) / 16 (bf16) / 32 (i8).
    pack = max(8, 32 // max(1, itemsize))

    if tile_rows is None:
        # ~4 MiB of native-dtype logits per block.  VMEM budget per step:
        # 2x native tile (double buffer) + ~3 full-width f32 intermediates,
        # which stays well under the 48 MiB limit below even for bf16 inputs.
        bytes_per_row = max(1, c * itemsize)
        tile_rows = (4 * 1024 * 1024) // bytes_per_row
        tile_rows = min(tile_rows, 4096)
    tile_rows = max(pack, (int(tile_rows) // pack) * pack)
    tile_rows = min(tile_rows, _round_up(n, pack))

    grid_n = pl.cdiv(n, tile_rows)          # partial last block handled in-kernel

    t2d = target.astype(jnp.int32).reshape(n, 1)
    n_valid = jnp.array([n], dtype=jnp.int32)

    cost = pl.CostEstimate(
        flops=5 * n * c,
        transcendentals=n * c + n,           # exp per element + log per row
        bytes_accessed=n * c * itemsize + n * 4 + grid_n * 8 * 128 * 4,
    )

    partials = pl.pallas_call(
        _ce_partial_kernel,
        out_shape=jax.ShapeDtypeStruct((grid_n, 8, 128), jnp.float32),
        grid_spec=pltpu.PrefetchScalarGridSpec(
            num_scalar_prefetch=1,
            grid=(grid_n,),
            in_specs=[
                pl.BlockSpec((tile_rows, c), lambda i, nv: (i, 0)),  # logits row tile
                pl.BlockSpec((tile_rows, 1), lambda i, nv: (i, 0)),  # target row tile
            ],
            out_specs=pl.BlockSpec((1, 8, 128), lambda i, nv: (i, 0, 0)),
        ),
        compiler_params=pltpu.CompilerParams(
            dimension_semantics=("parallel",),        # row blocks independent
            vmem_limit_bytes=48 * 1024 * 1024,        # headroom under v7x 64 MiB
        ),
        cost_estimate=cost,
    )(n_valid, logits, t2d)

    # Tiny finishing reduction (grid_n values) outside the kernel.
    return jnp.sum(partials[:, 0, 0]) / jnp.float32(n)


if __name__ == "__main__":
    key = jax.random.PRNGKey(0)
    k1, k2, k3, k4 = jax.random.split(key, 4)

    loss_fn = jax.jit(cross_entropy_loss, static_argnames=("tile_rows",))

    # Primary test: small batch, matches the torch module's forward(output, target).
    N, C = 8, 32
    logits = jax.random.normal(k1, (N, C), dtype=jnp.float32)
    target = jax.random.randint(k2, (N,), 0, C, dtype=jnp.int32)

    loss = loss_fn(logits, target)
    jax.block_until_ready(loss)

    logp = jax.nn.log_softmax(logits, axis=-1)
    ref = -jnp.mean(logp[jnp.arange(N), target])
    assert jnp.allclose(loss, ref, atol=1e-5, rtol=1e-5), (loss, ref)

    # Secondary test: multi-block parallel grid + partial last block (no jnp.pad).
    N2, C2 = 200, 32
    logits2 = jax.random.normal(k3, (N2, C2), dtype=jnp.float32)
    target2 = jax.random.randint(k4, (N2,), 0, C2, dtype=jnp.int32)
    loss2 = loss_fn(logits2, target2, tile_rows=64)   # grid of 4; last block has 8 valid rows
    jax.block_until_ready(loss2)
    logp2 = jax.nn.log_softmax(logits2, axis=-1)
    ref2 = -jnp.mean(logp2[jnp.arange(N2), target2])
    assert jnp.allclose(loss2, ref2, atol=1e-5, rtol=1e-5), (loss2, ref2)

    print("KERNEL_OK")
</pallas_src>

<mosaic_0001>
module attributes {stable_mosaic.version = 11 : i64} {
  func.func @_ce_partial_kernel(%arg0: i32, %arg1: memref<1xi32, #tpu.memory_space<smem>>, %arg2: memref<8x32xf32, #tpu.memory_space<vmem>>, %arg3: memref<8x1xi32, #tpu.memory_space<vmem>>, %arg4: memref<1x8x128xf32, #tpu.memory_space<vmem>>) attributes {dimension_semantics = [#tpu.dimension_semantics<parallel>], iteration_bounds = array<i64: 1>, scalar_prefetch = 1 : i64, scratch_operands = 0 : i64, tpu.core_type = #tpu.core_type<tc>, window_params = [{transform_indices = @transform_0, window_bounds = array<i64: 8, 32>}, {transform_indices = @transform_1, window_bounds = array<i64: 8, 1>}, {transform_indices = @transform_2, window_bounds = array<i64: 1, 8, 128>}]} {
    %c0 = arith.constant 0 : index
    %0 = memref.load %arg1[%c0] : memref<1xi32, #tpu.memory_space<smem>>
    %c0_0 = arith.constant 0 : index
    %c0_1 = arith.constant 0 : index
    %1 = vector.load %arg2[%c0_0, %c0_1] : memref<8x32xf32, #tpu.memory_space<vmem>>, vector<8x32xf32>
    %c0_2 = arith.constant 0 : index
    %c0_3 = arith.constant 0 : index
    %2 = vector.load %arg3[%c0_2, %c0_3] : memref<8x1xi32, #tpu.memory_space<vmem>>, vector<8x1xi32>
    %cst = arith.constant dense<0xFF800000> : vector<8xf32>
    %3 = vector.multi_reduction <maximumf>, %1, %cst [1] : vector<8x32xf32> to vector<8xf32>
    %4 = vector.shape_cast %3 : vector<8xf32> to vector<8x1xf32>
    %5 = vector.broadcast %4 : vector<8x1xf32> to vector<8x32xf32>
    %6 = arith.subf %1, %5 : vector<8x32xf32>
    %7 = math.exp %6 : vector<8x32xf32>
    %cst_4 = arith.constant dense<0.000000e+00> : vector<8xf32>
    %8 = vector.multi_reduction <add>, %7, %cst_4 [1] : vector<8x32xf32> to vector<8xf32>
    %9 = vector.shape_cast %8 : vector<8xf32> to vector<8x1xf32>
    %10 = math.log %9 : vector<8x1xf32>
    %11 = arith.addf %4, %10 : vector<8x1xf32>
    %12 = tpu.iota {dimensions = array<i32: 1>} : vector<8x32xi32>
    %13 = vector.broadcast %2 : vector<8x1xi32> to vector<8x32xi32>
    %14 = arith.cmpi eq, %12, %13 : vector<8x32xi32>
    %cst_5 = arith.constant 0.000000e+00 : f32
    %15 = vector.broadcast %cst_5 : f32 to vector<8x32xf32>
    %16 = arith.select %14, %1, %15 : vector<8x32xi1>, vector<8x32xf32>
    %cst_6 = arith.constant dense<0.000000e+00> : vector<8xf32>
    %17 = vector.multi_reduction <add>, %16, %cst_6 [1] : vector<8x32xf32> to vector<8xf32>
    %18 = vector.shape_cast %17 : vector<8xf32> to vector<8x1xf32>
    %19 = arith.subf %11, %18 : vector<8x1xf32>
    %c8_i32 = arith.constant 8 : i32
    %20 = arith.muli %arg0, %c8_i32 : i32
    %21 = tpu.iota {dimensions = array<i32: 0>} : vector<8x1xi32>
    %22 = vector.broadcast %20 : i32 to vector<8x1xi32>
    %23 = arith.addi %22, %21 : vector<8x1xi32>
    %24 = vector.broadcast %0 : i32 to vector<8x1xi32>
    %25 = arith.cmpi slt, %23, %24 : vector<8x1xi32>
    %cst_7 = arith.constant 0.000000e+00 : f32
    %26 = vector.broadcast %cst_7 : f32 to vector<8x1xf32>
    %27 = arith.select %25, %19, %26 : vector<8x1xi1>, vector<8x1xf32>
    %28 = vector.shape_cast %27 : vector<8x1xf32> to vector<1x8x1xf32>
    %cst_8 = arith.constant dense<0.000000e+00> : vector<1xf32>
    %29 = vector.multi_reduction <add>, %28, %cst_8 [1, 2] : vector<1x8x1xf32> to vector<1xf32>
    %30 = vector.shape_cast %29 : vector<1xf32> to vector<1x1x1xf32>
    %31 = vector.extract %30[0, 0, 0] : f32 from vector<1x1x1xf32>
    %32 = vector.broadcast %31 : f32 to vector<1x8x128xf32>
    %c0_9 = arith.constant 0 : index
    %c0_10 = arith.constant 0 : index
    %c0_11 = arith.constant 0 : index
    %33 = vector.load %arg4[%c0_9, %c0_10, %c0_11] : memref<1x8x128xf32, #tpu.memory_space<vmem>>, vector<1x8x128xf32>
    tpu.vector_store %arg4[%c0_9, %c0_10, %c0_11], %32 {strides = array<i32>} : memref<1x8x128xf32, #tpu.memory_space<vmem>>, vector<1x8x128xf32>,
    return
  }
  func.func @transform_0(%arg0: i32, %arg1: memref<1xi32, #tpu.memory_space<smem>>) -> (i32, i32) {
    %c0_i32 = arith.constant 0 : i32
    %c0_i32_0 = arith.constant 0 : i32
    return %arg0, %c0_i32 : i32, i32
  }
  func.func @transform_1(%arg0: i32, %arg1: memref<1xi32, #tpu.memory_space<smem>>) -> (i32, i32) {
    %c0_i32 = arith.constant 0 : i32
    %c0_i32_0 = arith.constant 0 : i32
    return %arg0, %c0_i32 : i32, i32
  }
  func.func @transform_2(%arg0: i32, %arg1: memref<1xi32, #tpu.memory_space<smem>>) -> (i32, i32, i32) {
    %c0_i32 = arith.constant 0 : i32
    %c0_i32_0 = arith.constant 0 : i32
    %c0_i32_1 = arith.constant 0 : i32
    return %arg0, %c0_i32, %c0_i32_0 : i32, i32, i32
  }
}

</mosaic_0001>

<llo_original>
// kernel: cross_entropy_loss.1
$region0: #{cross_entropy_loss.1}
  #allocation0 [shape = 'u32[]', space=smem, size = 0x4, offset = 0x4, fixed_abs, tag = 'smem constant byte address 0x4 - core index']
  #allocation1 [shape = 'u32[144,128]{1,0:T(1,128)}', space=vmem, size = 0x12000, scoped, tag = 'internal scratch']
  #allocation2 [shape = 's32[1]{0}', space=sflag, size = 0x4, scoped, tag = 'scoped memory for cross_entropy_loss.1']
  #allocation3 [shape = 's32[1]{0:T(128)S(6)}', space=smem, size = 0x200, scoped, tag = 'prefetched SMEM operand 0']
  %s0 = inlined_call_operand.<no memory space> [shape: s32[1], index: 0, kind: input, shape index: {}]
  %s1 = inlined_call_operand.vmem [shape: f32[8,32], index: 1, kind: input, shape index: {}]
  %s2 = inlined_call_operand.vmem [shape: s32[8,1], index: 2, kind: input, shape index: {}]
  %s3 = inlined_call_operand.vmem [shape: f32[1,8,128], index: 3, kind: output, shape index: {}]
  %s4 = sld [smem:[#allocation0]]
  $region18: #{cross_entropy_loss.1} parent=0
    _
  %s6 = ssub.s32 1, %s4
  %s7 = scalar_select 0, %s6, %s4
  %8 = sst [smem:[#allocation3]] %s0
  // Predicated region
  $region2: #{cross_entropy_loss.1} parent=0 // pred_check
    _
  $region3: #{cross_entropy_loss.1} parent=0 // pred_check_branch
    %10 = sbr.rel (0) target = $region5
  $region4: #{cross_entropy_loss.1} parent=0 // pred_region
    _
  $region5: #{cross_entropy_loss.1} parent=0 // pred_fallthru
    _
  // Predicated region
  $region6: #{cross_entropy_loss.1} parent=0 // pred_check
    _
  $region7: #{cross_entropy_loss.1} parent=0 // pred_check_branch
    %12 = sbr.rel (0) target = $region9
  $region8: #{cross_entropy_loss.1} parent=0 // pred_region
    _
  $region9: #{cross_entropy_loss.1} parent=0 // pred_fallthru
    _
  %s13 = sld [smem:[#allocation3]]
  %v14 = vld [vmem:[%s1] sm:$0xff]
  %v15 = vld [vmem:[%s2] sm:$0xff]
  %vm16 = vcmask 261120
  %v17 = vsel %vm16, %v14, -inf
  %18 = vmax.xlane.f32.xlu0 %v17
  %v19 = vpop.xlane.xlu0 %18
  %v20 = vsub.f32 %v14, %v19
  %v21 = vmul.f32 %v20, 1.442695
  %v22 = vpow.pop %v21
  %v23 = vsel %vm16, %v22, 0.0
  %24 = vadd.xlane.f32.xlu0 %v23
  %v25 = vpop.xlane.xlu0 %24
  %v26 = vlog2.pop %v25
  %v27 = vmul.f32 %v26, 0.6931472
  %v28 = vadd.f32 %v19, %v27
  %v29 = vlaneseq
  %v30 = vand.u32 %v29, 127
  %31 = vset.pattern.permute.xlu0 0
  %32 = vperm.xlu0 %31, %v15
  %v33 = vpop.permute.xlu0 %32
  %vm34 = vcmp.eq.s32.totalorder %v30, %v33
  %v35 = vsel %vm34, %v14, 0.0
  %v36 = vsel %vm16, %v35, 0.0
  %37 = vadd.xlane.f32.xlu0 %v36
  %v38 = vpop.xlane.xlu0 %37
  %v39 = vsub.f32 %v28, %v38
  %s40 = smul.u32 0, 8
  %v41 = vlaneseq
  %v42 = vshrl.u32 %v41, 7
  %v43 = vstv %s40
  %v44 = vadd.s32 %v43, %v42
  %v45 = vstv %s13
  %vm46 = vcmp.lt.s32.totalorder %v44, %v45
  %v47 = vsel %vm46, %v39, 0.0
  %vm48 = vcmask 7168
  %v49 = vsel %vm48, %v47, 0.0
  %50 = vadd.xlane.f32.xlu0 %v49
  %v51 = vpop.xlane.xlu0 %50
  %v52 = vrot.slane %v51, 4
  %v53 = vadd.f32 %v51, %v52
  %v54 = vrot.slane %v53, 2
  %v55 = vadd.f32 %v53, %v54
  %v56 = vrot.slane %v55, 1
  %v57 = vadd.f32 %v55, %v56
  %s58 = vtos %v57
  %v59 = vstv %s58
  %60 = vst [vmem:[%s3] sm:$0xff] %v59
  // Predicated region
  $region10: #{cross_entropy_loss.1} parent=0 // pred_check
    _
  $region11: #{cross_entropy_loss.1} parent=0 // pred_check_branch
    %62 = sbr.rel (0) target = $region13
  $region12: #{cross_entropy_loss.1} parent=0 // pred_region
    _
  $region13: #{cross_entropy_loss.1} parent=0 // pred_fallthru
    _
  // Predicated region
  $region14: #{cross_entropy_loss.1} parent=0 // pred_check
    _
  $region15: #{cross_entropy_loss.1} parent=0 // pred_check_branch
    %64 = sbr.rel (0) target = $region17
  $region16: #{cross_entropy_loss.1} parent=0 // pred_region
    _
  $region17: #{cross_entropy_loss.1} parent=0 // pred_fallthru
    _

</llo_original>
